<compile_context>
chip_gen: v6e
topology: v6e:2x2x1
jax: 0.10.0
libtpu: 0.0.40
codegen_flags: <defaults>
</compile_context>

<pallas_src>
import math
import jax
import jax.numpy as jnp
from jax.experimental import pallas as pl
from jax.experimental.pallas import tpu as pltpu


def _round_up(x, m):
    return ((x + m - 1) // m) * m


def _per_buffer_target_bytes():
    """Per-generation target size for one (double-buffered) W slab."""
    try:
        kind = jax.devices()[0].device_kind.lower()
    except Exception:
        kind = ""
    if "v5 lite" in kind or "v5e" in kind or "v5lite" in kind:
        return 4 << 20   # v5e: ~820 GB/s -> 4 MiB is already ~5 us of DMA per step
    if "v6" in kind:
        return 8 << 20   # v6e: 128 MiB VMEM, ~1.4 TB/s -> bigger tiles are free
    return 7 << 20       # v7x (64 MiB VMEM, ~1.6 TB/s/TC) and unknown generations


# -----------------------------------------------------------------------------
# Kernel: one (Z, tile_out) slab of the hypernet weight matrix per grid step.
#   out_tile = new_z @ W_tile + b_tile     (MXU matmul, f32 accumulate, f32 bias)
# The grid axis is an independent stream over output columns -> "parallel"
# (megacore sharding on v7x). Purely HBM-bandwidth bound.
# -----------------------------------------------------------------------------
def _hypernet_kernel(z_ref, w_ref, b_ref, out_ref):
    out_ref[...] = (
        jnp.dot(z_ref[...], w_ref[...], preferred_element_type=jnp.float32)
        + b_ref[...]
    ).astype(out_ref.dtype)


def prepare_hypernet_params(w_hyper, b_hyper, *, tile_out=None,
                            stream_dtype=jnp.bfloat16):
    """ONE-TIME hypernet parameter prep (call at load time, NOT per forward).

    * Casts W to `stream_dtype` (bf16 default: halves HBM bytes on a bandwidth-bound
      op; this is a deliberate precision contract — pass jnp.float32 for exact parity
      with the f32 PyTorch module).
    * Zero-pads W / b once to a multiple of 128 output columns (lane-dense tiles,
      zero-fill invariant preserved for any masked edge).
    * Picks a per-generation, multiple-of-128 tile_out.
    """
    Z, W_total = w_hyper.shape
    elem = jnp.dtype(stream_dtype).itemsize

    if tile_out is None:
        target_bytes = _per_buffer_target_bytes()
        tile_out = max(128, (target_bytes // (Z * elem)) // 128 * 128)
    tile_out = int(min(int(tile_out), _round_up(W_total, 128)))
    assert tile_out % 128 == 0, "tile_out must be a multiple of 128 (lane-dense)"

    W_pad = _round_up(W_total, 128)
    w_s = w_hyper.astype(stream_dtype)
    b_row = b_hyper.astype(jnp.float32).reshape(1, W_total)
    if W_pad != W_total:
        w_s = jnp.pad(w_s, ((0, 0), (0, W_pad - W_total)))      # one-time, off hot path
        b_row = jnp.pad(b_row, ((0, 0), (0, W_pad - W_total)))
    jax.block_until_ready((w_s, b_row))                          # materialize the cache

    return {
        "w": w_s,                # (Z, W_pad)  stream_dtype, cached
        "b": b_row,              # (1, W_pad)  f32, cached
        "z_dim": Z,
        "w_total": W_total,
        "tile_out": tile_out,
        "stream_dtype": stream_dtype,
    }


def coeffnet_forward(coeffs, bases_z, params, *, force_pallas=False):
    """Coeffnet forward hot path.

    Returns (new_z, weights) with
        new_z   = sum_i coeffs[i] * bases_z[i]
        weights = hypernet(new_z) = new_z @ W_hyper + b_hyper

    `coeffs` may be (B,) (module semantics) or (M, B) to evaluate M coefficient sets
    against a single streamed pass over the hypernet weights (W stream amortized).
    """
    Z = params["z_dim"]
    W_total = params["w_total"]
    tile_out = params["tile_out"]
    w_s = params["w"]
    b_row = params["b"]
    sdt = params["stream_dtype"]

    squeeze = coeffs.ndim == 1
    c2 = coeffs.reshape(1, -1) if squeeze else coeffs
    # Hoisted coefficient combination (tiny M x B x Z contraction), f32 on the VPU/XLA.
    new_z = c2.astype(jnp.float32) @ bases_z.astype(jnp.float32)        # (M, Z) f32
    M = new_z.shape[0]
    z_s = new_z.astype(sdt)

    grid_n = pl.cdiv(W_total, tile_out)

    if grid_n <= 1 and not force_pallas:
        # Small-W fast path: whole W fits one tile -> plain XLA dot beats a 1-step grid.
        out = jnp.dot(z_s, w_s, preferred_element_type=jnp.float32) + b_row
        weights = out[:, :W_total]
    else:
        elem = jnp.dtype(sdt).itemsize
        need = (2 * tile_out * Z * elem        # double-buffered W slabs
                + 2 * tile_out * 4             # double-buffered bias slabs
                + 2 * M * tile_out * 4         # double-buffered output slabs
                + 2 * M * Z * elem)            # z rows
        vmem_limit = int(min(max(32 << 20, need + (8 << 20)), 64 << 20))

        weights = pl.pallas_call(
            _hypernet_kernel,
            out_shape=jax.ShapeDtypeStruct((M, W_total), jnp.float32),
            grid_spec=pltpu.PrefetchScalarGridSpec(
                num_scalar_prefetch=0,
                grid=(grid_n,),
                in_specs=[
                    pl.BlockSpec((M, Z), lambda j: (0, 0)),            # z rows (resident)
                    pl.BlockSpec((Z, tile_out), lambda j: (0, j)),     # W slab (cached sdt)
                    pl.BlockSpec((1, tile_out), lambda j: (0, j)),     # bias slab (f32)
                ],
                # Unpadded output: ragged last block is masked by Mosaic; each output
                # column depends only on its own W/bias column, so OOB garbage cannot
                # contaminate in-bounds lanes.
                out_specs=pl.BlockSpec((M, tile_out), lambda j: (0, j)),
            ),
            compiler_params=pltpu.CompilerParams(
                dimension_semantics=("parallel",),   # pure W stream -> megacore shard
                vmem_limit_bytes=vmem_limit,
            ),
        )(z_s, w_s, b_row)

    if squeeze:
        return new_z.reshape(Z), weights.reshape(W_total)
    return new_z, weights


if __name__ == "__main__":
    # Small shapes consistent with the module: bases_num basis z-vectors of dim z_dim,
    # hypernet emitting a flat weight vector of length weight_dim.
    bases_num = 8
    z_dim = 256
    weight_dim = 4000          # deliberately NOT a multiple of 128 (ragged edge path)

    key = jax.random.PRNGKey(0)
    k1, k2, k3 = jax.random.split(key, 3)

    # Coeffnet.__init__(nn_init=True): coeffs initialized to constant 1/sqrt(bases_num)
    coeffs = jnp.full((bases_num,), 1.0 / math.sqrt(bases_num), dtype=jnp.float32)
    bases_z = jax.random.normal(k1, (bases_num, z_dim), dtype=jnp.float32)

    # Synthetic deterministic hypernet parameters (linear map z -> flat weights).
    w_hyper = jax.random.normal(k2, (z_dim, weight_dim), dtype=jnp.float32) / math.sqrt(z_dim)
    b_hyper = 0.01 * jax.random.normal(k3, (weight_dim,), dtype=jnp.float32)

    # One-time parameter prep (bf16 cast + 128-pad happen HERE, not per call).
    # tile_out=1024 -> grid of 4 "parallel" steps, so both v7x TensorCores get work
    # even at this small demo size.
    params_pallas = prepare_hypernet_params(w_hyper, b_hyper, tile_out=1024)
    # Auto-sized params: at this small W the whole matrix fits one tile -> fast path.
    params_auto = prepare_hypernet_params(w_hyper, b_hyper)

    # Hot path through the Pallas streaming kernel (multi-step parallel grid).
    new_z, weights = coeffnet_forward(coeffs, bases_z, params_pallas, force_pallas=True)
    jax.block_until_ready((new_z, weights))

    # Small-W fast path (single tile -> plain XLA dot, no Pallas grid).
    new_z_fp, weights_fp = coeffnet_forward(coeffs, bases_z, params_auto)
    jax.block_until_ready((new_z_fp, weights_fp))

    # Pure-JAX reference of the module semantics (mirrors the bf16 stream contract).
    ref_z = (bases_z * coeffs[:, None]).sum(axis=0)
    ref_w = (
        ref_z.astype(jnp.bfloat16).astype(jnp.float32)
        @ w_hyper.astype(jnp.bfloat16).astype(jnp.float32)
        + b_hyper
    )

    assert new_z.shape == (z_dim,) and weights.shape == (weight_dim,)
    assert jnp.allclose(new_z, ref_z, atol=1e-4, rtol=1e-4), "new_z mismatch (pallas)"
    assert jnp.allclose(weights, ref_w, atol=2e-3, rtol=2e-3), "weights mismatch (pallas)"
    assert jnp.allclose(new_z_fp, ref_z, atol=1e-4, rtol=1e-4), "new_z mismatch (fast path)"
    assert jnp.allclose(weights_fp, ref_w, atol=2e-3, rtol=2e-3), "weights mismatch (fast path)"

    print("KERNEL_OK")
</pallas_src>

<mosaic_0001>
module attributes {stable_mosaic.version = 11 : i64} {
  func.func @_hypernet_kernel(%arg0: i32, %arg1: memref<1x256xbf16, #tpu.memory_space<vmem>>, %arg2: memref<256x1024xbf16, #tpu.memory_space<vmem>>, %arg3: memref<1x1024xf32, #tpu.memory_space<vmem>>, %arg4: memref<1x1024xf32, #tpu.memory_space<vmem>>) attributes {dimension_semantics = [#tpu.dimension_semantics<parallel>], iteration_bounds = array<i64: 4>, scalar_prefetch = 0 : i64, scratch_operands = 0 : i64, tpu.core_type = #tpu.core_type<tc>, window_params = [{pipeline_mode = #tpu.pipeline_mode<synchronous>, transform_indices = @transform_0, window_bounds = array<i64: 1, 256>}, {transform_indices = @transform_1, window_bounds = array<i64: 256, 1024>}, {transform_indices = @transform_2, window_bounds = array<i64: 1, 1024>}, {transform_indices = @transform_3, window_bounds = array<i64: 1, 1024>}]} {
    %c0 = arith.constant 0 : index
    %c0_0 = arith.constant 0 : index
    %0 = vector.load %arg1[%c0, %c0_0] : memref<1x256xbf16, #tpu.memory_space<vmem>>, vector<1x256xbf16>
    %c0_1 = arith.constant 0 : index
    %c0_2 = arith.constant 0 : index
    %1 = vector.load %arg2[%c0_1, %c0_2] : memref<256x1024xbf16, #tpu.memory_space<vmem>>, vector<256x1024xbf16>
    %cst = arith.constant dense<0.000000e+00> : vector<1x1024xf32>
    %2 = tpu.matmul %0, %1, %cst {dimension_numbers = #tpu.dot_dimension_numbers<[1], [0], [0], [1], [0, 0, 1, 1], [], []>} : vector<1x256xbf16>, vector<256x1024xbf16>, vector<1x1024xf32> -> vector<1x1024xf32>
    %c0_3 = arith.constant 0 : index
    %c0_4 = arith.constant 0 : index
    %3 = vector.load %arg3[%c0_3, %c0_4] : memref<1x1024xf32, #tpu.memory_space<vmem>>, vector<1x1024xf32>
    %4 = arith.addf %2, %3 : vector<1x1024xf32>
    %c0_5 = arith.constant 0 : index
    %c0_6 = arith.constant 0 : index
    %5 = vector.load %arg4[%c0_5, %c0_6] : memref<1x1024xf32, #tpu.memory_space<vmem>>, vector<1x1024xf32>
    tpu.vector_store %arg4[%c0_5, %c0_6], %4 {strides = array<i32>} : memref<1x1024xf32, #tpu.memory_space<vmem>>, vector<1x1024xf32>,
    return
  }
  func.func @transform_0(%arg0: i32) -> (i32, i32) {
    %c0_i32 = arith.constant 0 : i32
    %c0_i32_0 = arith.constant 0 : i32
    %c0_i32_1 = arith.constant 0 : i32
    return %c0_i32, %c0_i32_0 : i32, i32
  }
  func.func @transform_1(%arg0: i32) -> (i32, i32) {
    %c0_i32 = arith.constant 0 : i32
    %c0_i32_0 = arith.constant 0 : i32
    return %c0_i32, %arg0 : i32, i32
  }
  func.func @transform_2(%arg0: i32) -> (i32, i32) {
    %c0_i32 = arith.constant 0 : i32
    %c0_i32_0 = arith.constant 0 : i32
    return %c0_i32, %arg0 : i32, i32
  }
  func.func @transform_3(%arg0: i32) -> (i32, i32) {
    %c0_i32 = arith.constant 0 : i32
    %c0_i32_0 = arith.constant 0 : i32
    return %c0_i32, %arg0 : i32, i32
  }
}

</mosaic_0001>

<llo_original>
// kernel: tpu_custom_call.1
$region0: #{tpu_custom_call.1}
  #allocation0 [shape = 'u32[]', space=smem, size = 0x4, offset = 0x4, fixed_abs, tag = 'smem constant byte address 0x4 - core index']
  #allocation1 [shape = 'u32[144,128]{1,0:T(1,128)}', space=vmem, size = 0x12000, scoped, tag = 'internal scratch']
  %s0 = inlined_call_operand.hbm [shape: bf16[1,256], index: 0, kind: input, shape index: {}]
  %s1 = inlined_call_operand.hbm [shape: bf16[256,4096], index: 1, kind: input, shape index: {}]
  %s2 = inlined_call_operand.hbm [shape: f32[1,4096], index: 2, kind: input, shape index: {}]
  %s3 = inlined_call_operand.hbm [shape: f32[1,4000], index: 3, kind: output, shape index: {}]
  %s4 = sld [smem:[#allocation0]]
  $region57: #{tpu_custom_call.1} parent=0
    _
  %s6 = ssub.s32 1, %s4
  %s7 = scalar_select 0, %s6, %s4
  $region1: #{tpu_custom_call.1} parent=0
    #allocation2 [shape = 'u8[1024]{0}', space=vmem, size = 0x400, scoped, tag = 'input window, operand 0, single buffered']
    #allocation3 [shape = 's32[2]{0}', space=sflag, size = 0x8, scoped, tag = 'scoped memory for tpu_custom_call.1']
    #allocation4 [shape = 's32[2]{0}', space=sflag, size = 0x8, scoped, tag = 'scoped memory for tpu_custom_call.1']
    #allocation5 [shape = 'u8[1048576]{0}', space=vmem, size = 0x100000, scoped, tag = 'input window, operand 1']
    #allocation6 [shape = 's32[2]{0}', space=sflag, size = 0x8, scoped, tag = 'scoped memory for tpu_custom_call.1']
    #allocation7 [shape = 'u8[8192]{0}', space=vmem, size = 0x2000, scoped, tag = 'input window, operand 2']
    #allocation8 [shape = 'u8[8192]{0}', space=vmem, size = 0x2000, scoped, tag = 'output window, operand 0']
    %8 = vsyncpa [#allocation3], 0
    %9 = vsyncpa [#allocation6], 0
    %s10 = scalar_lea.sflag [#allocation6], 1
    %11 = vsyncpa %s10, 0
    %12 = vsyncpa [#allocation4], 0
    %s13 = scalar_lea.sflag [#allocation4], 1
    %14 = vsyncpa %s13, 0
    loop: start=0, step=1, limit=6
    $region2: #{tpu_custom_call.1} parent=1 // loop_pre_header
      _
    $region3: #{tpu_custom_call.1} parent=1 // loop_header
      %s16 = sphi 0, %s20
      %p17 = scmp.ge.s32.totalorder %s16, 6
      %s24 = sphi 0, %s24
      %s26 = sphi 0, %s24
      %s27 = sphi 0, %s26
      %s41 = sphi 0, %s27
      %s47 = sphi 0, %s49
      %s50 = sphi 0, %s47
      %s51 = sphi 0, %s50
      %s67 = sphi 0, %s51
      %s73 = sphi 0, %s75
      %s76 = sphi 0, %s73
      %s77 = sphi 0, %s76
      %s93 = sphi 0, %s77
      %s99 = sphi 0, %s101
      %s102 = sphi 0, %s99
      %s103 = sphi 0, %s102
      %s119 = sphi 0, %s103
    $region4: #{tpu_custom_call.1} parent=1 // loop_header_branch
      %19 = sbr.rel (%p17) target = $region8
    $region5: #{tpu_custom_call.1} parent=1 // loop_body
      %s21 = ssub.s32 %s16, 1
      %s22 = ssub.s32 %s16, 2
      %s23 = sadd.s32 %s16, 1
      %s25 = sadd.s32 %s24, 1
      %p28 = scmp.eq.s32.totalorder %s16, 3
      %p29 = scmp.ne.s32.totalorder %s24, %s26
      %p30 = scmp.eq.s32.totalorder %s16, 0
      %p31 = por %p29, %p30
      %p32 = scmp.ne.s32.totalorder %s24, %s26
      %p33 = scmp.eq.s32.totalorder %s21, 3
      %p34 = por %p32, %p33
      %p35 = scmp.ne.s32.totalorder %s26, %s27
      %p36 = scmp.eq.s32.totalorder %s21, 0
      %p37 = por %p35, %p36
      %p38 = scmp.ne.s32.totalorder %s26, %s27
      %p39 = scmp.eq.s32.totalorder %s22, 3
      %p40 = por %p38, %p39
      %p42 = scmp.ne.s32.totalorder %s27, %s41
      %p43 = scmp.eq.s32.totalorder %s22, 0
      %p44 = por %p42, %p43
      %s45 = ssub.s32 %s16, %s23
      %p46 = scmp.eq.s32.totalorder %s45, 0
      %s48 = sadd.s32 %s47, 1
      %s49 = scalar_select %p46, %s47, %s48
      %p52 = pneg %p46
      %p53 = scmp.eq.s32.totalorder %s16, 3
      %p54 = por %p52, %p53
      %p55 = scmp.ne.s32.totalorder %s47, %s50
      %p56 = scmp.eq.s32.totalorder %s16, 0
      %p57 = por %p55, %p56
      %p58 = scmp.ne.s32.totalorder %s47, %s50
      %p59 = scmp.eq.s32.totalorder %s21, 3
      %p60 = por %p58, %p59
      %p61 = scmp.ne.s32.totalorder %s50, %s51
      %p62 = scmp.eq.s32.totalorder %s21, 0
      %p63 = por %p61, %p62
      %p64 = scmp.ne.s32.totalorder %s50, %s51
      %p65 = scmp.eq.s32.totalorder %s22, 3
      %p66 = por %p64, %p65
      %p68 = scmp.ne.s32.totalorder %s51, %s67
      %p69 = scmp.eq.s32.totalorder %s22, 0
      %p70 = por %p68, %p69
      %s71 = ssub.s32 %s16, %s23
      %p72 = scmp.eq.s32.totalorder %s71, 0
      %s74 = sadd.s32 %s73, 1
      %s75 = scalar_select %p72, %s73, %s74
      %p78 = pneg %p72
      %p79 = scmp.eq.s32.totalorder %s16, 3
      %p80 = por %p78, %p79
      %p81 = scmp.ne.s32.totalorder %s73, %s76
      %p82 = scmp.eq.s32.totalorder %s16, 0
      %p83 = por %p81, %p82
      %p84 = scmp.ne.s32.totalorder %s73, %s76
      %p85 = scmp.eq.s32.totalorder %s21, 3
      %p86 = por %p84, %p85
      %p87 = scmp.ne.s32.totalorder %s76, %s77
      %p88 = scmp.eq.s32.totalorder %s21, 0
      %p89 = por %p87, %p88
      %p90 = scmp.ne.s32.totalorder %s76, %s77
      %p91 = scmp.eq.s32.totalorder %s22, 3
      %p92 = por %p90, %p91
      %p94 = scmp.ne.s32.totalorder %s77, %s93
      %p95 = scmp.eq.s32.totalorder %s22, 0
      %p96 = por %p94, %p95
      %s97 = ssub.s32 %s16, %s23
      %p98 = scmp.eq.s32.totalorder %s97, 0
      %s100 = sadd.s32 %s99, 1
      %s101 = scalar_select %p98, %s99, %s100
      %p104 = pneg %p98
      %p105 = scmp.eq.s32.totalorder %s16, 3
      %p106 = por %p104, %p105
      %p107 = scmp.ne.s32.totalorder %s99, %s102
      %p108 = scmp.eq.s32.totalorder %s16, 0
      %p109 = por %p107, %p108
      %p110 = scmp.ne.s32.totalorder %s99, %s102
      %p111 = scmp.eq.s32.totalorder %s21, 3
      %p112 = por %p110, %p111
      %p113 = scmp.ne.s32.totalorder %s102, %s103
      %p114 = scmp.eq.s32.totalorder %s21, 0
      %p115 = por %p113, %p114
      %p116 = scmp.ne.s32.totalorder %s102, %s103
      %p117 = scmp.eq.s32.totalorder %s22, 3
      %p118 = por %p116, %p117
      %p120 = scmp.ne.s32.totalorder %s103, %s119
      %p121 = scmp.eq.s32.totalorder %s22, 0
      %p122 = por %p120, %p121
      %p123 = scmp.le.s32.totalorder 1, %s16
      %p124 = scmp.lt.s32.totalorder %s16, 5
      %p125 = pnand %p123, %p124
      %p126 = pneg %p125
      // Predicated region
      $region9: #{tpu_custom_call.1} parent=5 // pred_check
        _
      $region10: #{tpu_custom_call.1} parent=5 // pred_check_branch
        %128 = sbr.rel (%p125) target = $region12
      $region11: #{tpu_custom_call.1} parent=5 // pred_region
        %s129 = ssub.s32 %s16, 1
        // Predicated region
        $region13: #{tpu_custom_call.1} parent=11 // pred_check
          %p130 = pneg %p37
        $region14: #{tpu_custom_call.1} parent=11 // pred_check_branch
          %132 = sbr.rel (%p130) target = $region16
        $region15: #{tpu_custom_call.1} parent=11 // pred_region
          %s134 = ssub.s32 32, 32
          %135 = vsyncadd [#allocation3], %s134
          %s137 = sshll.u32 [#allocation2], 4
          %s138 = int_to_ptr.vmem [resolvable:$true] %s137
          %140 = dma.hbm_to_vmem [thread:$0]  %s0, 32, %s138, [#allocation3]
        $region16: #{tpu_custom_call.1} parent=11 // pred_fallthru
          _
      $region12: #{tpu_custom_call.1} parent=5 // pred_fallthru
        _
      %p141 = scmp.lt.s32.totalorder %s16, 4
      // Predicated region
      $region17: #{tpu_custom_call.1} parent=5 // pred_check
        %p142 = pneg %p141
      $region18: #{tpu_custom_call.1} parent=5 // pred_check_branch
        %144 = sbr.rel (%p142) target = $region20
      $region19: #{tpu_custom_call.1} parent=5 // pred_region
        // Predicated region
        $region21: #{tpu_custom_call.1} parent=19 // pred_check
          %p145 = pneg %p57
        $region22: #{tpu_custom_call.1} parent=19 // pred_check_branch
          %147 = sbr.rel (%p145) target = $region24
        $region23: #{tpu_custom_call.1} parent=19 // pred_region
          %s148 = sand.u32 %s16, 1
          %s149 = scalar_lea.sflag [#allocation6], %s148
          %s150 = sand.u32 %s47, 1
          %s151 = smul.addr %s150, 1024
          %s152 = scalar_lea.vmem [#allocation5], %s151
          %s153 = smul.u32 8, %s16
          %s155 = ssub.s32 16384, 16384
          %156 = vsyncadd %s149, %s155
          %s157 = smul.addr %s153, 64
          %s158 = scalar_lea.hbm %s1, %s157
          %s159 = sshll.u32 %s152, 4
          %s160 = int_to_ptr.vmem [resolvable:$true] %s159
          %165 = dma.hbm_to_vmem [thread:$0]  %s158, 16384, %s160, %s149, 2048, 512, 32
        $region24: #{tpu_custom_call.1} parent=19 // pred_fallthru
          _
        // Predicated region
        $region25: #{tpu_custom_call.1} parent=19 // pred_check
          %p166 = pneg %p83
        $region26: #{tpu_custom_call.1} parent=19 // pred_check_branch
          %168 = sbr.rel (%p166) target = $region28
        $region27: #{tpu_custom_call.1} parent=19 // pred_region
          %s169 = sand.u32 %s16, 1
          %s170 = scalar_lea.sflag [#allocation6], %s169
          %s171 = sand.u32 %s73, 1
          %s172 = smul.addr %s171, 8
          %s173 = scalar_lea.vmem [#allocation7], %s172
          %s174 = smul.u32 8, %s16
          %s176 = ssub.s32 128, 128
          %177 = vsyncadd %s170, %s176
          %s178 = smul.addr %s174, 16
          %s179 = scalar_lea.hbm %s2, %s178
          %s181 = sshll.u32 %s173, 4
          %s182 = int_to_ptr.vmem [resolvable:$true] %s181
          %184 = dma.hbm_to_vmem [thread:$0]  %s179, 128, %s182, %s170
        $region28: #{tpu_custom_call.1} parent=19 // pred_fallthru
          _
      $region20: #{tpu_custom_call.1} parent=5 // pred_fallthru
        _
      %p185 = scmp.le.s32.totalorder 1, %s16
      %p186 = scmp.lt.s32.totalorder %s16, 5
      %p187 = pnand %p185, %p186
      %p188 = pneg %p187
      // Predicated region
      $region29: #{tpu_custom_call.1} parent=5 // pred_check
        _
      $region30: #{tpu_custom_call.1} parent=5 // pred_check_branch
        %190 = sbr.rel (%p187) target = $region32
      $region31: #{tpu_custom_call.1} parent=5 // pred_region
        %s191 = ssub.s32 %s16, 1
        // Predicated region
        $region33: #{tpu_custom_call.1} parent=31 // pred_check
          %p192 = pneg %p37
        $region34: #{tpu_custom_call.1} parent=31 // pred_check_branch
          %194 = sbr.rel (%p192) target = $region36
        $region35: #{tpu_custom_call.1} parent=31 // pred_region
          %195 = dma.done [#allocation3], 32
        $region36: #{tpu_custom_call.1} parent=31 // pred_fallthru
          _
        %s196 = sand.u32 %s21, 1
        %s197 = scalar_lea.sflag [#allocation6], %s196
        %s198 = sand.u32 %s50, 1
        %s199 = smul.addr %s198, 1024
        %s200 = scalar_lea.vmem [#allocation5], %s199
        // Predicated region
        $region37: #{tpu_custom_call.1} parent=31 // pred_check
          %p201 = pneg %p63
        $region38: #{tpu_custom_call.1} parent=31 // pred_check_branch
          %203 = sbr.rel (%p201) target = $region40
        $region39: #{tpu_custom_call.1} parent=31 // pred_region
          %204 = dma.done %s197, 16384
        $region40: #{tpu_custom_call.1} parent=31 // pred_fallthru
          _
        %s205 = sand.u32 %s21, 1
        %s206 = scalar_lea.sflag [#allocation6], %s205
        %s207 = sand.u32 %s76, 1
        %s208 = smul.addr %s207, 8
        %s209 = scalar_lea.vmem [#allocation7], %s208
        // Predicated region
        $region41: #{tpu_custom_call.1} parent=31 // pred_check
          %p210 = pneg %p89
        $region42: #{tpu_custom_call.1} parent=31 // pred_check_branch
          %212 = sbr.rel (%p210) target = $region44
        $region43: #{tpu_custom_call.1} parent=31 // pred_region
          %213 = dma.done %s206, 128
        $region44: #{tpu_custom_call.1} parent=31 // pred_fallthru
          _
        %p214 = pneg %p37
        %p215 = pneg %p34
        %s216 = sand.u32 %s21, 1
        %s217 = scalar_lea.sflag [#allocation6], %s216
        %s218 = sand.u32 %s50, 1
        %s219 = smul.addr %s218, 1024
        %s220 = scalar_lea.vmem [#allocation5], %s219
        %p221 = pneg %p63
        %p222 = pneg %p60
        %s223 = sand.u32 %s21, 1
        %s224 = scalar_lea.sflag [#allocation6], %s223
        %s225 = sand.u32 %s76, 1
        %s226 = smul.addr %s225, 8
        %s227 = scalar_lea.vmem [#allocation7], %s226
        %p228 = pneg %p89
        %p229 = pneg %p86
        %p230 = pneg %p115
        %p231 = pneg %p112
        %s232 = sand.u32 %s102, 1
        %s233 = scalar_lea.sflag [#allocation4], %s232
        %s234 = sand.u32 %s102, 1
        %s235 = smul.addr %s234, 8
        %s236 = scalar_lea.vmem [#allocation8], %s235
        %s237 = smul.u32 8, %s21
        %s238 = smul.u32 8, %s21
        %s239 = smul.u32 8, %s21
        %v240 = vld [vmem:[#allocation2] sm:$0x3]
        %v241 = vld [vmem:[%s200] sm:$0xff]
        %v242 = vld [vmem:[%s200 + $0x8] sm:$0xff]
        %v243 = vld [vmem:[%s200 + $0x10] sm:$0xff]
        %v244 = vld [vmem:[%s200 + $0x18] sm:$0xff]
        %v245 = vld [vmem:[%s200 + $0x20] sm:$0xff]
        %v246 = vld [vmem:[%s200 + $0x28] sm:$0xff]
        %v247 = vld [vmem:[%s200 + $0x30] sm:$0xff]
        %v248 = vld [vmem:[%s200 + $0x38] sm:$0xff]
        %v249 = vld [vmem:[%s200 + $0x40] sm:$0xff]
        %v250 = vld [vmem:[%s200 + $0x48] sm:$0xff]
        %v251 = vld [vmem:[%s200 + $0x50] sm:$0xff]
        %v252 = vld [vmem:[%s200 + $0x58] sm:$0xff]
        %v253 = vld [vmem:[%s200 + $0x60] sm:$0xff]
        %v254 = vld [vmem:[%s200 + $0x68] sm:$0xff]
        %v255 = vld [vmem:[%s200 + $0x70] sm:$0xff]
        %v256 = vld [vmem:[%s200 + $0x78] sm:$0xff]
        %v257 = vld [vmem:[%s200 + $0x80] sm:$0xff]
        %v258 = vld [vmem:[%s200 + $0x88] sm:$0xff]
        %v259 = vld [vmem:[%s200 + $0x90] sm:$0xff]
        %v260 = vld [vmem:[%s200 + $0x98] sm:$0xff]
        %v261 = vld [vmem:[%s200 + $0xa0] sm:$0xff]
        %v262 = vld [vmem:[%s200 + $0xa8] sm:$0xff]
        %v263 = vld [vmem:[%s200 + $0xb0] sm:$0xff]
        %v264 = vld [vmem:[%s200 + $0xb8] sm:$0xff]
        %v265 = vld [vmem:[%s200 + $0xc0] sm:$0xff]
        %v266 = vld [vmem:[%s200 + $0xc8] sm:$0xff]
        %v267 = vld [vmem:[%s200 + $0xd0] sm:$0xff]
        %v268 = vld [vmem:[%s200 + $0xd8] sm:$0xff]
        %v269 = vld [vmem:[%s200 + $0xe0] sm:$0xff]
        %v270 = vld [vmem:[%s200 + $0xe8] sm:$0xff]
        %v271 = vld [vmem:[%s200 + $0xf0] sm:$0xff]
        %v272 = vld [vmem:[%s200 + $0xf8] sm:$0xff]
        %v273 = vld [vmem:[%s200 + $0x100] sm:$0xff]
        %v274 = vld [vmem:[%s200 + $0x108] sm:$0xff]
        %v275 = vld [vmem:[%s200 + $0x110] sm:$0xff]
        %v276 = vld [vmem:[%s200 + $0x118] sm:$0xff]
        %v277 = vld [vmem:[%s200 + $0x120] sm:$0xff]
        %v278 = vld [vmem:[%s200 + $0x128] sm:$0xff]
        %v279 = vld [vmem:[%s200 + $0x130] sm:$0xff]
        %v280 = vld [vmem:[%s200 + $0x138] sm:$0xff]
        %v281 = vld [vmem:[%s200 + $0x140] sm:$0xff]
        %v282 = vld [vmem:[%s200 + $0x148] sm:$0xff]
        %v283 = vld [vmem:[%s200 + $0x150] sm:$0xff]
        %v284 = vld [vmem:[%s200 + $0x158] sm:$0xff]
        %v285 = vld [vmem:[%s200 + $0x160] sm:$0xff]
        %v286 = vld [vmem:[%s200 + $0x168] sm:$0xff]
        %v287 = vld [vmem:[%s200 + $0x170] sm:$0xff]
        %v288 = vld [vmem:[%s200 + $0x178] sm:$0xff]
        %v289 = vld [vmem:[%s200 + $0x180] sm:$0xff]
        %v290 = vld [vmem:[%s200 + $0x188] sm:$0xff]
        %v291 = vld [vmem:[%s200 + $0x190] sm:$0xff]
        %v292 = vld [vmem:[%s200 + $0x198] sm:$0xff]
        %v293 = vld [vmem:[%s200 + $0x1a0] sm:$0xff]
        %v294 = vld [vmem:[%s200 + $0x1a8] sm:$0xff]
        %v295 = vld [vmem:[%s200 + $0x1b0] sm:$0xff]
        %v296 = vld [vmem:[%s200 + $0x1b8] sm:$0xff]
        %v297 = vld [vmem:[%s200 + $0x1c0] sm:$0xff]
        %v298 = vld [vmem:[%s200 + $0x1c8] sm:$0xff]
        %v299 = vld [vmem:[%s200 + $0x1d0] sm:$0xff]
        %v300 = vld [vmem:[%s200 + $0x1d8] sm:$0xff]
        %v301 = vld [vmem:[%s200 + $0x1e0] sm:$0xff]
        %v302 = vld [vmem:[%s200 + $0x1e8] sm:$0xff]
        %v303 = vld [vmem:[%s200 + $0x1f0] sm:$0xff]
        %v304 = vld [vmem:[%s200 + $0x1f8] sm:$0xff]
        %v305 = vld [vmem:[%s200 + $0x200] sm:$0xff]
        %v306 = vld [vmem:[%s200 + $0x208] sm:$0xff]
        %v307 = vld [vmem:[%s200 + $0x210] sm:$0xff]
        %v308 = vld [vmem:[%s200 + $0x218] sm:$0xff]
        %v309 = vld [vmem:[%s200 + $0x220] sm:$0xff]
        %v310 = vld [vmem:[%s200 + $0x228] sm:$0xff]
        %v311 = vld [vmem:[%s200 + $0x230] sm:$0xff]
        %v312 = vld [vmem:[%s200 + $0x238] sm:$0xff]
        %v313 = vld [vmem:[%s200 + $0x240] sm:$0xff]
        %v314 = vld [vmem:[%s200 + $0x248] sm:$0xff]
        %v315 = vld [vmem:[%s200 + $0x250] sm:$0xff]
        %v316 = vld [vmem:[%s200 + $0x258] sm:$0xff]
        %v317 = vld [vmem:[%s200 + $0x260] sm:$0xff]
        %v318 = vld [vmem:[%s200 + $0x268] sm:$0xff]
        %v319 = vld [vmem:[%s200 + $0x270] sm:$0xff]
        %v320 = vld [vmem:[%s200 + $0x278] sm:$0xff]
        %v321 = vld [vmem:[%s200 + $0x280] sm:$0xff]
        %v322 = vld [vmem:[%s200 + $0x288] sm:$0xff]
        %v323 = vld [vmem:[%s200 + $0x290] sm:$0xff]
        %v324 = vld [vmem:[%s200 + $0x298] sm:$0xff]
        %v325 = vld [vmem:[%s200 + $0x2a0] sm:$0xff]
        %v326 = vld [vmem:[%s200 + $0x2a8] sm:$0xff]
        %v327 = vld [vmem:[%s200 + $0x2b0] sm:$0xff]
        %v328 = vld [vmem:[%s200 + $0x2b8] sm:$0xff]
        %v329 = vld [vmem:[%s200 + $0x2c0] sm:$0xff]
        %v330 = vld [vmem:[%s200 + $0x2c8] sm:$0xff]
        %v331 = vld [vmem:[%s200 + $0x2d0] sm:$0xff]
        %v332 = vld [vmem:[%s200 + $0x2d8] sm:$0xff]
        %v333 = vld [vmem:[%s200 + $0x2e0] sm:$0xff]
        %v334 = vld [vmem:[%s200 + $0x2e8] sm:$0xff]
        %v335 = vld [vmem:[%s200 + $0x2f0] sm:$0xff]
        %v336 = vld [vmem:[%s200 + $0x2f8] sm:$0xff]
        %v337 = vld [vmem:[%s200 + $0x300] sm:$0xff]
        %v338 = vld [vmem:[%s200 + $0x308] sm:$0xff]
        %v339 = vld [vmem:[%s200 + $0x310] sm:$0xff]
        %v340 = vld [vmem:[%s200 + $0x318] sm:$0xff]
        %v341 = vld [vmem:[%s200 + $0x320] sm:$0xff]
        %v342 = vld [vmem:[%s200 + $0x328] sm:$0xff]
        %v343 = vld [vmem:[%s200 + $0x330] sm:$0xff]
        %v344 = vld [vmem:[%s200 + $0x338] sm:$0xff]
        %v345 = vld [vmem:[%s200 + $0x340] sm:$0xff]
        %v346 = vld [vmem:[%s200 + $0x348] sm:$0xff]
        %v347 = vld [vmem:[%s200 + $0x350] sm:$0xff]
        %v348 = vld [vmem:[%s200 + $0x358] sm:$0xff]
        %v349 = vld [vmem:[%s200 + $0x360] sm:$0xff]
        %v350 = vld [vmem:[%s200 + $0x368] sm:$0xff]
        %v351 = vld [vmem:[%s200 + $0x370] sm:$0xff]
        %v352 = vld [vmem:[%s200 + $0x378] sm:$0xff]
        %v353 = vld [vmem:[%s200 + $0x380] sm:$0xff]
        %v354 = vld [vmem:[%s200 + $0x388] sm:$0xff]
        %v355 = vld [vmem:[%s200 + $0x390] sm:$0xff]
        %v356 = vld [vmem:[%s200 + $0x398] sm:$0xff]
        %v357 = vld [vmem:[%s200 + $0x3a0] sm:$0xff]
        %v358 = vld [vmem:[%s200 + $0x3a8] sm:$0xff]
        %v359 = vld [vmem:[%s200 + $0x3b0] sm:$0xff]
        %v360 = vld [vmem:[%s200 + $0x3b8] sm:$0xff]
        %v361 = vld [vmem:[%s200 + $0x3c0] sm:$0xff]
        %v362 = vld [vmem:[%s200 + $0x3c8] sm:$0xff]
        %v363 = vld [vmem:[%s200 + $0x3d0] sm:$0xff]
        %v364 = vld [vmem:[%s200 + $0x3d8] sm:$0xff]
        %v365 = vld [vmem:[%s200 + $0x3e0] sm:$0xff]
        %v366 = vld [vmem:[%s200 + $0x3e8] sm:$0xff]
        %v367 = vld [vmem:[%s200 + $0x3f0] sm:$0xff]
        %v368 = vld [vmem:[%s200 + $0x3f8] sm:$0xff]
        %v369 = vld [vmem:[%s209] sm:$0xff]
        %v372 = vunpack.c.l.s4 1966171168
        %v373 = vunpack.c.0.s8 %v372
        %v374 = vlaneseq
        %v375 = vshrl.u32 %v374, 7
        %v376 = vsub.s32 %v373, %v375
        %v377 = vrot.slane %v240, %v376
        %v378 = vcombine.high %v377, %v377
        %v380 = vunpack.c.l.s4 1966171168
        %v381 = vunpack.c.0.s8 %v380
        %v382 = vlaneseq
        %v383 = vshrl.u32 %v382, 7
        %v384 = vsub.s32 %v381, %v383
        %v385 = vrot.slane %v377, %v384
        %v387 = vunpack.c.l.s4 1966171168
        %v388 = vunpack.c.0.s8 %v387
        %v389 = vlaneseq
        %v390 = vshrl.u32 %v389, 7
        %v391 = vsub.s32 %v388, %v390
        %v392 = vrot.slane %v378, %v391
        %v523 = vunpack.c.l.b16 %v241
        %v524 = vunpack.c.h.b16 %v241
        %v525 = vunpack.c.l.b16 %v242
        %v526 = vunpack.c.h.b16 %v242
        %v527 = vunpack.c.l.b16 %v243
        %v528 = vunpack.c.h.b16 %v243
        %v529 = vunpack.c.l.b16 %v244
        %v530 = vunpack.c.h.b16 %v244
        %v531 = vunpack.c.l.b16 %v245
        %v532 = vunpack.c.h.b16 %v245
        %v533 = vunpack.c.l.b16 %v246
        %v534 = vunpack.c.h.b16 %v246
        %v535 = vunpack.c.l.b16 %v247
        %v536 = vunpack.c.h.b16 %v247
        %v537 = vunpack.c.l.b16 %v248
        %v538 = vunpack.c.h.b16 %v248
        %v539 = vunpack.c.l.b16 %v249
        %v540 = vunpack.c.h.b16 %v249
        %v541 = vunpack.c.l.b16 %v250
        %v542 = vunpack.c.h.b16 %v250
        %v543 = vunpack.c.l.b16 %v251
        %v544 = vunpack.c.h.b16 %v251
        %v545 = vunpack.c.l.b16 %v252
        %v546 = vunpack.c.h.b16 %v252
        %v547 = vunpack.c.l.b16 %v253
        %v548 = vunpack.c.h.b16 %v253
        %v549 = vunpack.c.l.b16 %v254
        %v550 = vunpack.c.h.b16 %v254
        %v551 = vunpack.c.l.b16 %v255
        %v552 = vunpack.c.h.b16 %v255
        %v553 = vunpack.c.l.b16 %v256
        %v554 = vunpack.c.h.b16 %v256
        %v555 = vunpack.c.l.b16 %v257
        %v556 = vunpack.c.h.b16 %v257
        %v557 = vunpack.c.l.b16 %v258
        %v558 = vunpack.c.h.b16 %v258
        %v559 = vunpack.c.l.b16 %v259
        %v560 = vunpack.c.h.b16 %v259
        %v561 = vunpack.c.l.b16 %v260
        %v562 = vunpack.c.h.b16 %v260
        %v563 = vunpack.c.l.b16 %v261
        %v564 = vunpack.c.h.b16 %v261
        %v565 = vunpack.c.l.b16 %v262
        %v566 = vunpack.c.h.b16 %v262
        %v567 = vunpack.c.l.b16 %v263
        %v568 = vunpack.c.h.b16 %v263
        %v569 = vunpack.c.l.b16 %v264
        %v570 = vunpack.c.h.b16 %v264
        %v571 = vunpack.c.l.b16 %v265
        %v572 = vunpack.c.h.b16 %v265
        %v573 = vunpack.c.l.b16 %v266
        %v574 = vunpack.c.h.b16 %v266
        %v575 = vunpack.c.l.b16 %v267
        %v576 = vunpack.c.h.b16 %v267
        %v577 = vunpack.c.l.b16 %v268
        %v578 = vunpack.c.h.b16 %v268
        %v579 = vunpack.c.l.b16 %v269
        %v580 = vunpack.c.h.b16 %v269
        %v581 = vunpack.c.l.b16 %v270
        %v582 = vunpack.c.h.b16 %v270
        %v583 = vunpack.c.l.b16 %v271
        %v584 = vunpack.c.h.b16 %v271
        %v585 = vunpack.c.l.b16 %v272
        %v586 = vunpack.c.h.b16 %v272
        %v587 = vunpack.c.l.b16 %v273
        %v588 = vunpack.c.h.b16 %v273
        %v589 = vunpack.c.l.b16 %v274
        %v590 = vunpack.c.h.b16 %v274
        %v591 = vunpack.c.l.b16 %v275
        %v592 = vunpack.c.h.b16 %v275
        %v593 = vunpack.c.l.b16 %v276
        %v594 = vunpack.c.h.b16 %v276
        %v595 = vunpack.c.l.b16 %v277
        %v596 = vunpack.c.h.b16 %v277
        %v597 = vunpack.c.l.b16 %v278
        %v598 = vunpack.c.h.b16 %v278
        %v599 = vunpack.c.l.b16 %v279
        %v600 = vunpack.c.h.b16 %v279
        %v601 = vunpack.c.l.b16 %v280
        %v602 = vunpack.c.h.b16 %v280
        %v603 = vunpack.c.l.b16 %v281
        %v604 = vunpack.c.h.b16 %v281
        %v605 = vunpack.c.l.b16 %v282
        %v606 = vunpack.c.h.b16 %v282
        %v607 = vunpack.c.l.b16 %v283
        %v608 = vunpack.c.h.b16 %v283
        %v609 = vunpack.c.l.b16 %v284
        %v610 = vunpack.c.h.b16 %v284
        %v611 = vunpack.c.l.b16 %v285
        %v612 = vunpack.c.h.b16 %v285
        %v613 = vunpack.c.l.b16 %v286
        %v614 = vunpack.c.h.b16 %v286
        %v615 = vunpack.c.l.b16 %v287
        %v616 = vunpack.c.h.b16 %v287
        %v617 = vunpack.c.l.b16 %v288
        %v618 = vunpack.c.h.b16 %v288
        %v619 = vunpack.c.l.b16 %v289
        %v620 = vunpack.c.h.b16 %v289
        %v621 = vunpack.c.l.b16 %v290
        %v622 = vunpack.c.h.b16 %v290
        %v623 = vunpack.c.l.b16 %v291
        %v624 = vunpack.c.h.b16 %v291
        %v625 = vunpack.c.l.b16 %v292
        %v626 = vunpack.c.h.b16 %v292
        %v627 = vunpack.c.l.b16 %v293
        %v628 = vunpack.c.h.b16 %v293
        %v629 = vunpack.c.l.b16 %v294
        %v630 = vunpack.c.h.b16 %v294
        %v631 = vunpack.c.l.b16 %v295
        %v632 = vunpack.c.h.b16 %v295
        %v633 = vunpack.c.l.b16 %v296
        %v634 = vunpack.c.h.b16 %v296
        %v635 = vunpack.c.l.b16 %v297
        %v636 = vunpack.c.h.b16 %v297
        %v637 = vunpack.c.l.b16 %v298
        %v638 = vunpack.c.h.b16 %v298
        %v639 = vunpack.c.l.b16 %v299
        %v640 = vunpack.c.h.b16 %v299
        %v641 = vunpack.c.l.b16 %v300
        %v642 = vunpack.c.h.b16 %v300
        %v643 = vunpack.c.l.b16 %v301
        %v644 = vunpack.c.h.b16 %v301
        %v645 = vunpack.c.l.b16 %v302
        %v646 = vunpack.c.h.b16 %v302
        %v647 = vunpack.c.l.b16 %v303
        %v648 = vunpack.c.h.b16 %v303
        %v649 = vunpack.c.l.b16 %v304
        %v650 = vunpack.c.h.b16 %v304
        %v651 = vunpack.c.l.b16 %v305
        %v652 = vunpack.c.h.b16 %v305
        %v653 = vunpack.c.l.b16 %v306
        %v654 = vunpack.c.h.b16 %v306
        %v655 = vunpack.c.l.b16 %v307
        %v656 = vunpack.c.h.b16 %v307
        %v657 = vunpack.c.l.b16 %v308
        %v658 = vunpack.c.h.b16 %v308
        %v659 = vunpack.c.l.b16 %v309
        %v660 = vunpack.c.h.b16 %v309
        %v661 = vunpack.c.l.b16 %v310
        %v662 = vunpack.c.h.b16 %v310
        %v663 = vunpack.c.l.b16 %v311
        %v664 = vunpack.c.h.b16 %v311
        %v665 = vunpack.c.l.b16 %v312
        %v666 = vunpack.c.h.b16 %v312
        %v667 = vunpack.c.l.b16 %v313
        %v668 = vunpack.c.h.b16 %v313
        %v669 = vunpack.c.l.b16 %v314
        %v670 = vunpack.c.h.b16 %v314
        %v671 = vunpack.c.l.b16 %v315
        %v672 = vunpack.c.h.b16 %v315
        %v673 = vunpack.c.l.b16 %v316
        %v674 = vunpack.c.h.b16 %v316
        %v675 = vunpack.c.l.b16 %v317
        %v676 = vunpack.c.h.b16 %v317
        %v677 = vunpack.c.l.b16 %v318
        %v678 = vunpack.c.h.b16 %v318
        %v679 = vunpack.c.l.b16 %v319
        %v680 = vunpack.c.h.b16 %v319
        %v681 = vunpack.c.l.b16 %v320
        %v682 = vunpack.c.h.b16 %v320
        %v683 = vunpack.c.l.b16 %v321
        %v684 = vunpack.c.h.b16 %v321
        %v685 = vunpack.c.l.b16 %v322
        %v686 = vunpack.c.h.b16 %v322
        %v687 = vunpack.c.l.b16 %v323
        %v688 = vunpack.c.h.b16 %v323
        %v689 = vunpack.c.l.b16 %v324
        %v690 = vunpack.c.h.b16 %v324
        %v691 = vunpack.c.l.b16 %v325
        %v692 = vunpack.c.h.b16 %v325
        %v693 = vunpack.c.l.b16 %v326
        %v694 = vunpack.c.h.b16 %v326
        %v695 = vunpack.c.l.b16 %v327
        %v696 = vunpack.c.h.b16 %v327
        %v697 = vunpack.c.l.b16 %v328
        %v698 = vunpack.c.h.b16 %v328
        %v699 = vunpack.c.l.b16 %v329
        %v700 = vunpack.c.h.b16 %v329
        %v701 = vunpack.c.l.b16 %v330
        %v702 = vunpack.c.h.b16 %v330
        %v703 = vunpack.c.l.b16 %v331
        %v704 = vunpack.c.h.b16 %v331
        %v705 = vunpack.c.l.b16 %v332
        %v706 = vunpack.c.h.b16 %v332
        %v707 = vunpack.c.l.b16 %v333
        %v708 = vunpack.c.h.b16 %v333
        %v709 = vunpack.c.l.b16 %v334
        %v710 = vunpack.c.h.b16 %v334
        %v711 = vunpack.c.l.b16 %v335
        %v712 = vunpack.c.h.b16 %v335
        %v713 = vunpack.c.l.b16 %v336
        %v714 = vunpack.c.h.b16 %v336
        %v715 = vunpack.c.l.b16 %v337
        %v716 = vunpack.c.h.b16 %v337
        %v717 = vunpack.c.l.b16 %v338
        %v718 = vunpack.c.h.b16 %v338
        %v719 = vunpack.c.l.b16 %v339
        %v720 = vunpack.c.h.b16 %v339
        %v721 = vunpack.c.l.b16 %v340
        %v722 = vunpack.c.h.b16 %v340
        %v723 = vunpack.c.l.b16 %v341
        %v724 = vunpack.c.h.b16 %v341
        %v725 = vunpack.c.l.b16 %v342
        %v726 = vunpack.c.h.b16 %v342
        %v727 = vunpack.c.l.b16 %v343
        %v728 = vunpack.c.h.b16 %v343
        %v729 = vunpack.c.l.b16 %v344
        %v730 = vunpack.c.h.b16 %v344
        %v731 = vunpack.c.l.b16 %v345
        %v732 = vunpack.c.h.b16 %v345
        %v733 = vunpack.c.l.b16 %v346
        %v734 = vunpack.c.h.b16 %v346
        %v735 = vunpack.c.l.b16 %v347
        %v736 = vunpack.c.h.b16 %v347
        %v737 = vunpack.c.l.b16 %v348
        %v738 = vunpack.c.h.b16 %v348
        %v739 = vunpack.c.l.b16 %v349
        %v740 = vunpack.c.h.b16 %v349
        %v741 = vunpack.c.l.b16 %v350
        %v742 = vunpack.c.h.b16 %v350
        %v743 = vunpack.c.l.b16 %v351
        %v744 = vunpack.c.h.b16 %v351
        %v745 = vunpack.c.l.b16 %v352
        %v746 = vunpack.c.h.b16 %v352
        %v747 = vunpack.c.l.b16 %v353
        %v748 = vunpack.c.h.b16 %v353
        %v749 = vunpack.c.l.b16 %v354
        %v750 = vunpack.c.h.b16 %v354
        %v751 = vunpack.c.l.b16 %v355
        %v752 = vunpack.c.h.b16 %v355
        %v753 = vunpack.c.l.b16 %v356
        %v754 = vunpack.c.h.b16 %v356
        %v755 = vunpack.c.l.b16 %v357
        %v756 = vunpack.c.h.b16 %v357
        %v757 = vunpack.c.l.b16 %v358
        %v758 = vunpack.c.h.b16 %v358
        %v759 = vunpack.c.l.b16 %v359
        %v760 = vunpack.c.h.b16 %v359
        %v761 = vunpack.c.l.b16 %v360
        %v762 = vunpack.c.h.b16 %v360
        %v763 = vunpack.c.l.b16 %v361
        %v764 = vunpack.c.h.b16 %v361
        %v765 = vunpack.c.l.b16 %v362
        %v766 = vunpack.c.h.b16 %v362
        %v767 = vunpack.c.l.b16 %v363
        %v768 = vunpack.c.h.b16 %v363
        %v769 = vunpack.c.l.b16 %v364
        %v770 = vunpack.c.h.b16 %v364
        %v771 = vunpack.c.l.b16 %v365
        %v772 = vunpack.c.h.b16 %v365
        %v773 = vunpack.c.l.b16 %v366
        %v774 = vunpack.c.h.b16 %v366
        %v775 = vunpack.c.l.b16 %v367
        %v776 = vunpack.c.h.b16 %v367
        %v777 = vunpack.c.l.b16 %v368
        %v778 = vunpack.c.h.b16 %v368
        %v779 = vpack.c.b16 %v531, %v523
        %v780 = vpack.c.b16 %v532, %v524
        %v781 = vpack.c.b16 %v533, %v525
        %v782 = vpack.c.b16 %v534, %v526
        %v783 = vpack.c.b16 %v535, %v527
        %v784 = vpack.c.b16 %v536, %v528
        %v785 = vpack.c.b16 %v537, %v529
        %v786 = vpack.c.b16 %v538, %v530
        %v787 = vpack.c.b16 %v547, %v539
        %v788 = vpack.c.b16 %v548, %v540
        %v789 = vpack.c.b16 %v549, %v541
        %v790 = vpack.c.b16 %v550, %v542
        %v791 = vpack.c.b16 %v551, %v543
        %v792 = vpack.c.b16 %v552, %v544
        %v793 = vpack.c.b16 %v553, %v545
        %v794 = vpack.c.b16 %v554, %v546
        %v795 = vpack.c.b16 %v563, %v555
        %v796 = vpack.c.b16 %v564, %v556
        %v797 = vpack.c.b16 %v565, %v557
        %v798 = vpack.c.b16 %v566, %v558
        %v799 = vpack.c.b16 %v567, %v559
        %v800 = vpack.c.b16 %v568, %v560
        %v801 = vpack.c.b16 %v569, %v561
        %v802 = vpack.c.b16 %v570, %v562
        %v803 = vpack.c.b16 %v579, %v571
        %v804 = vpack.c.b16 %v580, %v572
        %v805 = vpack.c.b16 %v581, %v573
        %v806 = vpack.c.b16 %v582, %v574
        %v807 = vpack.c.b16 %v583, %v575
        %v808 = vpack.c.b16 %v584, %v576
        %v809 = vpack.c.b16 %v585, %v577
        %v810 = vpack.c.b16 %v586, %v578
        %v811 = vpack.c.b16 %v595, %v587
        %v812 = vpack.c.b16 %v596, %v588
        %v813 = vpack.c.b16 %v597, %v589
        %v814 = vpack.c.b16 %v598, %v590
        %v815 = vpack.c.b16 %v599, %v591
        %v816 = vpack.c.b16 %v600, %v592
        %v817 = vpack.c.b16 %v601, %v593
        %v818 = vpack.c.b16 %v602, %v594
        %v819 = vpack.c.b16 %v611, %v603
        %v820 = vpack.c.b16 %v612, %v604
        %v821 = vpack.c.b16 %v613, %v605
        %v822 = vpack.c.b16 %v614, %v606
        %v823 = vpack.c.b16 %v615, %v607
        %v824 = vpack.c.b16 %v616, %v608
        %v825 = vpack.c.b16 %v617, %v609
        %v826 = vpack.c.b16 %v618, %v610
        %v827 = vpack.c.b16 %v627, %v619
        %v828 = vpack.c.b16 %v628, %v620
        %v829 = vpack.c.b16 %v629, %v621
        %v830 = vpack.c.b16 %v630, %v622
        %v831 = vpack.c.b16 %v631, %v623
        %v832 = vpack.c.b16 %v632, %v624
        %v833 = vpack.c.b16 %v633, %v625
        %v834 = vpack.c.b16 %v634, %v626
        %v835 = vpack.c.b16 %v643, %v635
        %v836 = vpack.c.b16 %v644, %v636
        %v837 = vpack.c.b16 %v645, %v637
        %v838 = vpack.c.b16 %v646, %v638
        %v839 = vpack.c.b16 %v647, %v639
        %v840 = vpack.c.b16 %v648, %v640
        %v841 = vpack.c.b16 %v649, %v641
        %v842 = vpack.c.b16 %v650, %v642
        %v843 = vpack.c.b16 %v659, %v651
        %v844 = vpack.c.b16 %v660, %v652
        %v845 = vpack.c.b16 %v661, %v653
        %v846 = vpack.c.b16 %v662, %v654
        %v847 = vpack.c.b16 %v663, %v655
        %v848 = vpack.c.b16 %v664, %v656
        %v849 = vpack.c.b16 %v665, %v657
        %v850 = vpack.c.b16 %v666, %v658
        %v851 = vpack.c.b16 %v675, %v667
        %v852 = vpack.c.b16 %v676, %v668
        %v853 = vpack.c.b16 %v677, %v669
        %v854 = vpack.c.b16 %v678, %v670
        %v855 = vpack.c.b16 %v679, %v671
        %v856 = vpack.c.b16 %v680, %v672
        %v857 = vpack.c.b16 %v681, %v673
        %v858 = vpack.c.b16 %v682, %v674
        %v859 = vpack.c.b16 %v691, %v683
        %v860 = vpack.c.b16 %v692, %v684
        %v861 = vpack.c.b16 %v693, %v685
        %v862 = vpack.c.b16 %v694, %v686
        %v863 = vpack.c.b16 %v695, %v687
        %v864 = vpack.c.b16 %v696, %v688
        %v865 = vpack.c.b16 %v697, %v689
        %v866 = vpack.c.b16 %v698, %v690
        %v867 = vpack.c.b16 %v707, %v699
        %v868 = vpack.c.b16 %v708, %v700
        %v869 = vpack.c.b16 %v709, %v701
        %v870 = vpack.c.b16 %v710, %v702
        %v871 = vpack.c.b16 %v711, %v703
        %v872 = vpack.c.b16 %v712, %v704
        %v873 = vpack.c.b16 %v713, %v705
        %v874 = vpack.c.b16 %v714, %v706
        %v875 = vpack.c.b16 %v723, %v715
        %v876 = vpack.c.b16 %v724, %v716
        %v877 = vpack.c.b16 %v725, %v717
        %v878 = vpack.c.b16 %v726, %v718
        %v879 = vpack.c.b16 %v727, %v719
        %v880 = vpack.c.b16 %v728, %v720
        %v881 = vpack.c.b16 %v729, %v721
        %v882 = vpack.c.b16 %v730, %v722
        %v883 = vpack.c.b16 %v739, %v731
        %v884 = vpack.c.b16 %v740, %v732
        %v885 = vpack.c.b16 %v741, %v733
        %v886 = vpack.c.b16 %v742, %v734
        %v887 = vpack.c.b16 %v743, %v735
        %v888 = vpack.c.b16 %v744, %v736
        %v889 = vpack.c.b16 %v745, %v737
        %v890 = vpack.c.b16 %v746, %v738
        %v891 = vpack.c.b16 %v755, %v747
        %v892 = vpack.c.b16 %v756, %v748
        %v893 = vpack.c.b16 %v757, %v749
        %v894 = vpack.c.b16 %v758, %v750
        %v895 = vpack.c.b16 %v759, %v751
        %v896 = vpack.c.b16 %v760, %v752
        %v897 = vpack.c.b16 %v761, %v753
        %v898 = vpack.c.b16 %v762, %v754
        %v899 = vpack.c.b16 %v771, %v763
        %v900 = vpack.c.b16 %v772, %v764
        %v901 = vpack.c.b16 %v773, %v765
        %v902 = vpack.c.b16 %v774, %v766
        %v903 = vpack.c.b16 %v775, %v767
        %v904 = vpack.c.b16 %v776, %v768
        %v905 = vpack.c.b16 %v777, %v769
        %v906 = vpack.c.b16 %v778, %v770
        %v1036 = vlaneseq
        %v1037 = vshrl.u32 %v1036, 7
        %v1038 = vsub.s32 0, %v1037
        %v1039 = vrot.slane %v369, %v1038
        %v1040 = vlaneseq
        %v1041 = vshrl.u32 %v1040, 7
        %v1042 = vsub.s32 1, %v1041
        %v1043 = vrot.slane %v369, %v1042
        %v1044 = vlaneseq
        %v1045 = vshrl.u32 %v1044, 7
        %v1046 = vsub.s32 2, %v1045
        %v1047 = vrot.slane %v369, %v1046
        %v1048 = vlaneseq
        %v1049 = vshrl.u32 %v1048, 7
        %v1050 = vsub.s32 3, %v1049
        %v1051 = vrot.slane %v369, %v1050
        %v1052 = vlaneseq
        %v1053 = vshrl.u32 %v1052, 7
        %v1054 = vsub.s32 4, %v1053
        %v1055 = vrot.slane %v369, %v1054
        %v1056 = vlaneseq
        %v1057 = vshrl.u32 %v1056, 7
        %v1058 = vsub.s32 5, %v1057
        %v1059 = vrot.slane %v369, %v1058
        %v1060 = vlaneseq
        %v1061 = vshrl.u32 %v1060, 7
        %v1062 = vsub.s32 6, %v1061
        %v1063 = vrot.slane %v369, %v1062
        %v1064 = vlaneseq
        %v1065 = vshrl.u32 %v1064, 7
        %v1066 = vsub.s32 7, %v1065
        %v1067 = vrot.slane %v369, %v1066
        %1076 = vmatprep.subr.bf16.mxu0 %v836
        %1077 = vmatpush1.bf16.msra.mxu0 %v835
        %1078 = vmatprep.subr.bf16.mxu0 %v828
        %1079 = vmatpush1.bf16.msra.mxu0 %v827
        %1080 = vmatprep.subr.bf16.mxu0 %v820
        %1081 = vmatpush1.bf16.msra.mxu0 %v819
        %1082 = vmatprep.subr.bf16.mxu0 %v812
        %1083 = vmatpush1.bf16.msra.mxu0 %v811
        %1084 = vmatprep.subr.bf16.mxu0 %v804
        %1085 = vmatpush1.bf16.msra.mxu0 %v803
        %1086 = vmatprep.subr.bf16.mxu0 %v796
        %1087 = vmatpush1.bf16.msra.mxu0 %v795
        %1088 = vmatprep.subr.bf16.mxu0 %v788
        %1089 = vmatpush1.bf16.msra.mxu0 %v787
        %1090 = vmatprep.subr.bf16.mxu0 %v780
        %1091 = vmatpush1.bf16.msra.mxu0 %v779
        %1092 = vmatprep.subr.bf16.mxu0 %v900
        %1093 = vmatpush2.bf16.msra.mxu0 %v899
        %1094 = vmatprep.subr.bf16.mxu0 %v892
        %1095 = vmatpush2.bf16.msra.mxu0 %v891
        %1096 = vmatprep.subr.bf16.mxu0 %v884
        %1097 = vmatpush2.bf16.msra.mxu0 %v883
        %1098 = vmatprep.subr.bf16.mxu0 %v876
        %1099 = vmatpush2.bf16.msra.mxu0 %v875
        %1100 = vmatprep.subr.bf16.mxu0 %v868
        %1101 = vmatpush2.bf16.msra.mxu0 %v867
        %1102 = vmatprep.subr.bf16.mxu0 %v860
        %1103 = vmatpush2.bf16.msra.mxu0 %v859
        %1104 = vmatprep.subr.bf16.mxu0 %v852
        %1105 = vmatpush2.bf16.msra.mxu0 %v851
        %1106 = vmatprep.subr.bf16.mxu0 %v844
        %1107 = vmatpush2.bf16.msra.mxu0 %v843
        %1108 = vmatprep.mubr.bf16.mxu0 %v392
        %1109 = vmatmul.mubr.bf16.gmra.mxu0 %v385
        %v1110 = vpop.f32.mrf.mxu0
        %v1111 = vadd.f32 %v1039, %v1110
        %v1112 = vpop.f32.mrf.mxu0
        %v1113 = vadd.f32 %v1043, %v1112
        %v1114 = vpop.f32.mrf.mxu0
        %v1115 = vpop.f32.mrf.mxu0
        %1116 = vdwg.mxu0
        %1117 = vmatprep.subr.bf16.mxu0 %v838
        %1118 = vmatpush1.bf16.msra.mxu0 %v837
        %1119 = vmatprep.subr.bf16.mxu0 %v830
        %1120 = vmatpush1.bf16.msra.mxu0 %v829
        %1121 = vmatprep.subr.bf16.mxu0 %v822
        %1122 = vmatpush1.bf16.msra.mxu0 %v821
        %1123 = vmatprep.subr.bf16.mxu0 %v814
        %1124 = vmatpush1.bf16.msra.mxu0 %v813
        %1125 = vmatprep.subr.bf16.mxu0 %v806
        %1126 = vmatpush1.bf16.msra.mxu0 %v805
        %1127 = vmatprep.subr.bf16.mxu0 %v798
        %1128 = vmatpush1.bf16.msra.mxu0 %v797
        %1129 = vmatprep.subr.bf16.mxu0 %v790
        %1130 = vmatpush1.bf16.msra.mxu0 %v789
        %1131 = vmatprep.subr.bf16.mxu0 %v782
        %1132 = vmatpush1.bf16.msra.mxu0 %v781
        %1133 = vmatprep.subr.bf16.mxu0 %v902
        %1134 = vmatpush2.bf16.msra.mxu0 %v901
        %1135 = vmatprep.subr.bf16.mxu0 %v894
        %1136 = vmatpush2.bf16.msra.mxu0 %v893
        %1137 = vmatprep.subr.bf16.mxu0 %v886
        %1138 = vmatpush2.bf16.msra.mxu0 %v885
        %1139 = vmatprep.subr.bf16.mxu0 %v878
        %1140 = vmatpush2.bf16.msra.mxu0 %v877
        %1141 = vmatprep.subr.bf16.mxu0 %v870
        %1142 = vmatpush2.bf16.msra.mxu0 %v869
        %1143 = vmatprep.subr.bf16.mxu0 %v862
        %1144 = vmatpush2.bf16.msra.mxu0 %v861
        %1145 = vmatprep.subr.bf16.mxu0 %v854
        %1146 = vmatpush2.bf16.msra.mxu0 %v853
        %1147 = vmatprep.subr.bf16.mxu0 %v846
        %1148 = vmatpush2.bf16.msra.mxu0 %v845
        %1149 = vmatprep.mubr.bf16.mxu0 %v392
        %1150 = vmatmul.mubr.bf16.gmra.mxu0 %v385
        %v1151 = vpop.f32.mrf.mxu0
        %v1152 = vadd.f32 %v1047, %v1151
        %v1153 = vpop.f32.mrf.mxu0
        %v1154 = vadd.f32 %v1051, %v1153
        %v1155 = vpop.f32.mrf.mxu0
        %v1156 = vpop.f32.mrf.mxu0
        %1157 = vdwg.mxu0
        %1158 = vmatprep.subr.bf16.mxu0 %v840
        %1159 = vmatpush1.bf16.msra.mxu0 %v839
        %1160 = vmatprep.subr.bf16.mxu0 %v832
        %1161 = vmatpush1.bf16.msra.mxu0 %v831
        %1162 = vmatprep.subr.bf16.mxu0 %v824
        %1163 = vmatpush1.bf16.msra.mxu0 %v823
        %1164 = vmatprep.subr.bf16.mxu0 %v816
        %1165 = vmatpush1.bf16.msra.mxu0 %v815
        %1166 = vmatprep.subr.bf16.mxu0 %v808
        %1167 = vmatpush1.bf16.msra.mxu0 %v807
        %1168 = vmatprep.subr.bf16.mxu0 %v800
        %1169 = vmatpush1.bf16.msra.mxu0 %v799
        %1170 = vmatprep.subr.bf16.mxu0 %v792
        %1171 = vmatpush1.bf16.msra.mxu0 %v791
        %1172 = vmatprep.subr.bf16.mxu0 %v784
        %1173 = vmatpush1.bf16.msra.mxu0 %v783
        %1174 = vmatprep.subr.bf16.mxu0 %v904
        %1175 = vmatpush2.bf16.msra.mxu0 %v903
        %1176 = vmatprep.subr.bf16.mxu0 %v896
        %1177 = vmatpush2.bf16.msra.mxu0 %v895
        %1178 = vmatprep.subr.bf16.mxu0 %v888
        %1179 = vmatpush2.bf16.msra.mxu0 %v887
        %1180 = vmatprep.subr.bf16.mxu0 %v880
        %1181 = vmatpush2.bf16.msra.mxu0 %v879
        %1182 = vmatprep.subr.bf16.mxu0 %v872
        %1183 = vmatpush2.bf16.msra.mxu0 %v871
        %1184 = vmatprep.subr.bf16.mxu0 %v864
        %1185 = vmatpush2.bf16.msra.mxu0 %v863
        %1186 = vmatprep.subr.bf16.mxu0 %v856
        %1187 = vmatpush2.bf16.msra.mxu0 %v855
        %1188 = vmatprep.subr.bf16.mxu0 %v848
        %1189 = vmatpush2.bf16.msra.mxu0 %v847
        %1190 = vmatprep.mubr.bf16.mxu0 %v392
        %1191 = vmatmul.mubr.bf16.gmra.mxu0 %v385
        %v1192 = vpop.f32.mrf.mxu0
        %v1193 = vadd.f32 %v1055, %v1192
        %v1194 = vpop.f32.mrf.mxu0
        %v1195 = vadd.f32 %v1059, %v1194
        %v1196 = vpop.f32.mrf.mxu0
        %v1197 = vpop.f32.mrf.mxu0
        %1198 = vdwg.mxu0
        %1199 = vmatprep.subr.bf16.mxu0 %v842
        %1200 = vmatpush1.bf16.msra.mxu0 %v841
        %1201 = vmatprep.subr.bf16.mxu0 %v834
        %1202 = vmatpush1.bf16.msra.mxu0 %v833
        %1203 = vmatprep.subr.bf16.mxu0 %v826
        %1204 = vmatpush1.bf16.msra.mxu0 %v825
        %1205 = vmatprep.subr.bf16.mxu0 %v818
        %1206 = vmatpush1.bf16.msra.mxu0 %v817
        %1207 = vmatprep.subr.bf16.mxu0 %v810
        %1208 = vmatpush1.bf16.msra.mxu0 %v809
        %1209 = vmatprep.subr.bf16.mxu0 %v802
        %1210 = vmatpush1.bf16.msra.mxu0 %v801
        %1211 = vmatprep.subr.bf16.mxu0 %v794
        %1212 = vmatpush1.bf16.msra.mxu0 %v793
        %1213 = vmatprep.subr.bf16.mxu0 %v786
        %1214 = vmatpush1.bf16.msra.mxu0 %v785
        %1215 = vmatprep.subr.bf16.mxu0 %v906
        %1216 = vmatpush2.bf16.msra.mxu0 %v905
        %1217 = vmatprep.subr.bf16.mxu0 %v898
        %1218 = vmatpush2.bf16.msra.mxu0 %v897
        %1219 = vmatprep.subr.bf16.mxu0 %v890
        %1220 = vmatpush2.bf16.msra.mxu0 %v889
        %1221 = vmatprep.subr.bf16.mxu0 %v882
        %1222 = vmatpush2.bf16.msra.mxu0 %v881
        %1223 = vmatprep.subr.bf16.mxu0 %v874
        %1224 = vmatpush2.bf16.msra.mxu0 %v873
        %1225 = vmatprep.subr.bf16.mxu0 %v866
        %1226 = vmatpush2.bf16.msra.mxu0 %v865
        %1227 = vmatprep.subr.bf16.mxu0 %v858
        %1228 = vmatpush2.bf16.msra.mxu0 %v857
        %1229 = vmatprep.subr.bf16.mxu0 %v850
        %1230 = vmatpush2.bf16.msra.mxu0 %v849
        %1231 = vmatprep.mubr.bf16.mxu0 %v392
        %1232 = vmatmul.mubr.bf16.gmra.mxu0 %v385
        %v1233 = vpop.f32.mrf.mxu0
        %v1234 = vadd.f32 %v1063, %v1233
        %v1235 = vpop.f32.mrf.mxu0
        %v1236 = vadd.f32 %v1067, %v1235
        %v1237 = vpop.f32.mrf.mxu0
        %v1238 = vpop.f32.mrf.mxu0
        %1239 = vdwg.mxu0
        %v1248 = vcombine.low %v1111, %v1113
        %v1249 = vcombine.low %v1152, %v1154
        %v1250 = vcombine.low %v1193, %v1195
        %v1251 = vcombine.low %v1234, %v1236
        %v1253 = vunpack.c.l.s4 1966171168
        %v1254 = vunpack.c.0.s8 %v1253
        %v1255 = vlaneseq
        %v1256 = vshrl.u32 %v1255, 7
        %v1257 = vsub.s32 %v1254, %v1256
        %v1258 = vrot.slane %v1248, %v1257
        %v1260 = vunpack.c.l.s4 1966171168
        %v1261 = vunpack.c.0.s8 %v1260
        %v1262 = vlaneseq
        %v1263 = vshrl.u32 %v1262, 7
        %v1264 = vsub.s32 %v1261, %v1263
        %v1265 = vrot.slane %v1249, %v1264
        %v1267 = vunpack.c.l.s4 1966171168
        %v1268 = vunpack.c.0.s8 %v1267
        %v1269 = vlaneseq
        %v1270 = vshrl.u32 %v1269, 7
        %v1271 = vsub.s32 %v1268, %v1270
        %v1272 = vrot.slane %v1250, %v1271
        %v1274 = vunpack.c.l.s4 1966171168
        %v1275 = vunpack.c.0.s8 %v1274
        %v1276 = vlaneseq
        %v1277 = vshrl.u32 %v1276, 7
        %v1278 = vsub.s32 %v1275, %v1277
        %v1279 = vrot.slane %v1251, %v1278
        %v1280 = vcombine.low %v1258, %v1265
        %v1281 = vcombine.low %v1272, %v1279
        %v1283 = vunpack.c.l.s4 1966171168
        %v1284 = vunpack.c.0.s8 %v1283
        %v1285 = vlaneseq
        %v1286 = vshrl.u32 %v1285, 7
        %v1287 = vsub.s32 %v1284, %v1286
        %v1288 = vrot.slane %v1280, %v1287
        %v1290 = vunpack.c.l.s4 1966171168
        %v1291 = vunpack.c.0.s8 %v1290
        %v1292 = vlaneseq
        %v1293 = vshrl.u32 %v1292, 7
        %v1294 = vsub.s32 %v1291, %v1293
        %v1295 = vrot.slane %v1281, %v1294
        %v1296 = vcombine.low %v1288, %v1295
        %1298 = vst [vmem:[%s236] sm:$0xff] %v1296
        %s1299 = sand.u32 %s102, 1
        %s1300 = scalar_lea.sflag [#allocation4], %s1299
        %s1301 = sand.u32 %s102, 1
        %s1302 = smul.addr %s1301, 8
        %s1303 = scalar_lea.vmem [#allocation8], %s1302
        // Predicated region
        $region45: #{tpu_custom_call.1} parent=31 // pred_check
          %p1304 = pneg %p112
        $region46: #{tpu_custom_call.1} parent=31 // pred_check_branch
          %1306 = sbr.rel (%p1304) target = $region48
        $region47: #{tpu_custom_call.1} parent=31 // pred_region
          %s1307 = smul.u32 8, %s21
          %s1309 = ssub.s32 128, 128
          %1310 = vsyncadd %s1300, %s1309
          %s1311 = smul.addr %s1307, 16
          %s1312 = scalar_lea.hbm %s3, %s1311
          %s1314 = sshll.u32 %s1303, 4
          %s1315 = int_to_ptr.vmem [resolvable:$true] %s1314
          %1317 = dma.vmem_to_hbm [thread:$0]  %s1315, 128, %s1312, %s1300
        $region48: #{tpu_custom_call.1} parent=31 // pred_fallthru
          _
      $region32: #{tpu_custom_call.1} parent=5 // pred_fallthru
        _
      %p1318 = scmp.le.s32.totalorder 2, %s16
      // Predicated region
      $region49: #{tpu_custom_call.1} parent=5 // pred_check
        %p1319 = pneg %p1318
      $region50: #{tpu_custom_call.1} parent=5 // pred_check_branch
        %1321 = sbr.rel (%p1319) target = $region52
      $region51: #{tpu_custom_call.1} parent=5 // pred_region
        %s1322 = ssub.s32 %s16, 2
        // Predicated region
        $region53: #{tpu_custom_call.1} parent=51 // pred_check
          %p1323 = pneg %p118
        $region54: #{tpu_custom_call.1} parent=51 // pred_check_branch
          %1325 = sbr.rel (%p1323) target = $region56
        $region55: #{tpu_custom_call.1} parent=51 // pred_region
          %s1326 = sand.u32 %s103, 1
          %s1327 = scalar_lea.sflag [#allocation4], %s1326
          %s1328 = sand.u32 %s103, 1
          %s1329 = smul.addr %s1328, 8
          %s1330 = scalar_lea.vmem [#allocation8], %s1329
          %1331 = dma.done %s1327, 128
        $region56: #{tpu_custom_call.1} parent=51 // pred_fallthru
          _
      $region52: #{tpu_custom_call.1} parent=5 // pred_fallthru
        _
    $region6: #{tpu_custom_call.1} parent=1 // loop_footer
      %s20 = sadd.s32 1, %s16
    $region7: #{tpu_custom_call.1} parent=1 // loop_footer_branch
      %15 = sbr.rel target = $region3
    $region8: #{tpu_custom_call.1} parent=1 // loop_exit
      _
    %1332 = vsyncpa [#allocation3], 1
    %s1333 = scalar_lea.sflag [#allocation3], 1
    %1334 = vsyncpa %s1333, 1
    %1335 = vsyncpa [#allocation6], 1
    %s1336 = scalar_lea.sflag [#allocation6], 1
    %1337 = vsyncpa %s1336, 1
    %1338 = vsyncpa [#allocation4], 1
    %s1339 = scalar_lea.sflag [#allocation4], 1
    %1340 = vsyncpa %s1339, 1

</llo_original>
